<compile_context>
chip_gen: v5e
topology: v5e:2x2
jax: 0.10.0
libtpu: 0.0.40
codegen_flags: <defaults>
</compile_context>

<pallas_src>
import jax
import jax.numpy as jnp
from jax.experimental import pallas as pl
from jax.experimental.pallas import tpu as pltpu


def _copy_kernel(x_ref, o_ref):
    o_ref[...] = x_ref[...]


# Lane widths to try for the flattened view (largest first); all are multiples
# of 128 so stores are full-width (no vst.msk partial stores).
_LANE_CANDIDATES = (4096, 2048, 1024, 512, 256, 128)
# ~2 MiB per buffer: in+out, double-buffered => ~8 MiB of VMEM, comfortably
# under the default scoped limits (16 MiB v5e, 32 MiB v6e/v7x) while still
# amortizing the ~0.35 us per-grid-step overhead (~85% of HBM roofline).
_TARGET_TILE_BYTES = 2 * 1024 * 1024


def device_copy(x: jax.Array) -> jax.Array:
    """Explicit HBM->HBM physical copy of `x` via a lane-dense Pallas kernel."""
    if x.size == 0:
        return x

    total = int(x.size)
    lanes = next((l for l in _LANE_CANDIDATES if total % l == 0), None)

    if lanes is None:
        # Ragged element count: single full-array 2D block (full extents are
        # always a legal block shape).  Rare fallback, small arrays only.
        flat = x.reshape(1, total)
        out = pl.pallas_call(
            _copy_kernel,
            out_shape=jax.ShapeDtypeStruct((1, total), x.dtype),
        )(flat)
        return out.reshape(x.shape)

    rows = total // lanes
    itemsize = jnp.dtype(x.dtype).itemsize
    row_bytes = lanes * itemsize

    # Sublane alignment: 8 for 32-bit, 16 for 16-bit, 32 for 8-bit dtypes.
    sublane_align = 8 * max(1, 4 // itemsize)
    tile_rows = _TARGET_TILE_BYTES // row_bytes
    tile_rows = max(sublane_align, (tile_rows // sublane_align) * sublane_align)
    if tile_rows >= rows or rows < sublane_align:
        # Whole-rows block (full extent along the sublane dim is always legal).
        tile_rows = rows

    x2d = x.reshape(rows, lanes)
    grid = (pl.cdiv(rows, tile_rows),)

    out = pl.pallas_call(
        _copy_kernel,
        out_shape=jax.ShapeDtypeStruct((rows, lanes), x.dtype),
        grid=grid,
        in_specs=[pl.BlockSpec((tile_rows, lanes), lambda i: (i, 0))],
        out_specs=pl.BlockSpec((tile_rows, lanes), lambda i: (i, 0)),
        compiler_params=pltpu.CompilerParams(
            dimension_semantics=("parallel",),
        ),
    )(x2d)
    return out.reshape(x.shape)


class BaseModelPallas:
    """JAX/Pallas port of BaseModel (abstract base class).

    Only the concrete members are implemented; abstract methods raise, exactly
    mirroring the PyTorch class.
    """

    def __init__(self, testing: bool = False):
        self.testing = testing
        # register_buffer('dummy', torch.empty(0), persistent=False)
        self.dummy = jnp.empty((0,), dtype=jnp.float32)

    @property
    def device(self):
        return self.dummy.devices().pop()

    @property
    def size_divisibility(self) -> int:
        return 1

    def _move_to_current_device(self, x: jax.Array, force_copy: bool = False) -> jax.Array:
        # `.to(device)` on an already-on-device tensor is a no-op; returning x
        # is the zero-cost equivalent (no HBM read/write at all).
        if not force_copy:
            return x
        # Explicit physical copy path (fresh output buffer), done at HBM
        # roofline by the Pallas kernel.
        return device_copy(x)

    # ---- Abstract in the original module — kept abstract here. ----
    def losses(self, inputs, targets):
        raise NotImplementedError

    def metrics(self, inputs, targets):
        raise NotImplementedError

    def forward(self, batched_inputs):
        # TODO(synk): forward is @abstractmethod in BaseModel; no concrete
        # computation exists to translate.
        raise NotImplementedError

    def preprocess_inputs(self, batched_inputs):
        raise NotImplementedError

    def process_outputs(self, outputs):
        raise NotImplementedError


if __name__ == "__main__":
    key = jax.random.PRNGKey(0)
    k0, k1 = jax.random.split(key)

    model = BaseModelPallas(testing=True)

    # --- Small NCHW input consistent with the module (batch=2, C=4, 16x16). ---
    x = jax.random.normal(k0, (2, 4, 16, 16), dtype=jnp.float32)

    # Fast path: move-to-device on an on-device array is a no-op (returns x).
    y_fast = model._move_to_current_device(x)
    assert y_fast is x

    # Explicit physical copy via the Pallas kernel (single lane-dense block).
    y = jax.block_until_ready(model._move_to_current_device(x, force_copy=True))
    assert y.shape == x.shape and y.dtype == x.dtype
    assert bool(jnp.array_equal(y, x))

    # --- Larger input to exercise the multi-step, multi-tile pipelined path. ---
    x_big = jax.random.normal(k1, (16, 4, 128, 128), dtype=jnp.float32)  # 8 MiB
    y_big = jax.block_until_ready(device_copy(x_big))
    assert y_big.shape == x_big.shape and y_big.dtype == x_big.dtype
    assert bool(jnp.array_equal(y_big, x_big))

    assert model.size_divisibility == 1
    print("KERNEL_OK")
</pallas_src>

<mosaic_0001>
module attributes {stable_mosaic.version = 11 : i64} {
  func.func @_copy_kernel(%arg0: i32, %arg1: memref<1x2048xf32, #tpu.memory_space<vmem>>, %arg2: memref<1x2048xf32, #tpu.memory_space<vmem>>) attributes {dimension_semantics = [#tpu.dimension_semantics<parallel>], iteration_bounds = array<i64: 1>, scalar_prefetch = 0 : i64, scratch_operands = 0 : i64, tpu.core_type = #tpu.core_type<tc>, window_params = [{transform_indices = @transform_0, window_bounds = array<i64: 1, 2048>}, {transform_indices = @transform_1, window_bounds = array<i64: 1, 2048>}]} {
    %c0 = arith.constant 0 : index
    %c0_0 = arith.constant 0 : index
    %0 = vector.load %arg1[%c0, %c0_0] : memref<1x2048xf32, #tpu.memory_space<vmem>>, vector<1x2048xf32>
    %c0_1 = arith.constant 0 : index
    %c0_2 = arith.constant 0 : index
    %1 = vector.load %arg2[%c0_1, %c0_2] : memref<1x2048xf32, #tpu.memory_space<vmem>>, vector<1x2048xf32>
    tpu.vector_store %arg2[%c0_1, %c0_2], %0 {strides = array<i32>} : memref<1x2048xf32, #tpu.memory_space<vmem>>, vector<1x2048xf32>,
    return
  }
  func.func @transform_0(%arg0: i32) -> (i32, i32) {
    %c0_i32 = arith.constant 0 : i32
    %c0_i32_0 = arith.constant 0 : i32
    return %arg0, %c0_i32 : i32, i32
  }
  func.func @transform_1(%arg0: i32) -> (i32, i32) {
    %c0_i32 = arith.constant 0 : i32
    %c0_i32_0 = arith.constant 0 : i32
    return %arg0, %c0_i32 : i32, i32
  }
}

</mosaic_0001>

<llo_original>
// kernel: tpu_custom_call.1
$region0: #{tpu_custom_call.1}
  #allocation0 [shape = 'u32[]', space=smem, size = 0x4, offset = 0x4, fixed_abs, tag = 'smem constant byte address 0x4 - core index']
  #allocation1 [shape = 'u32[72,128]{1,0:T(1,128)}', space=vmem, size = 0x9000, scoped, tag = 'internal scratch']
  %s0 = inlined_call_operand.hbm [shape: f32[1,2048], index: 0, kind: input, shape index: {}]
  %s1 = inlined_call_operand.hbm [shape: f32[1,2048], index: 1, kind: output, shape index: {}]
  %s2 = sld [smem:[#allocation0]]
  $region18: #{tpu_custom_call.1} parent=0
    _
  %s4 = ssub.s32 1, %s2
  %s5 = scalar_select 0, %s4, %s2
  $region1: #{tpu_custom_call.1} parent=0
    #allocation2 [shape = 'u8[8192]{0}', space=vmem, size = 0x2000, scoped, tag = 'input window, operand 0, single buffered']
    #allocation3 [shape = 's32[1]{0}', space=sflag, size = 0x4, scoped, tag = 'scoped memory for tpu_custom_call.1']
    #allocation4 [shape = 's32[1]{0}', space=sflag, size = 0x4, scoped, tag = 'scoped memory for tpu_custom_call.1']
    #allocation5 [shape = 'u8[8192]{0}', space=vmem, size = 0x2000, scoped, tag = 'output window, operand 0, single buffered']
    %6 = vsyncpa [#allocation3], 0
    %7 = vsyncpa [#allocation4], 0
    // Predicated region
    $region2: #{tpu_custom_call.1} parent=1 // pred_check
      _
    $region3: #{tpu_custom_call.1} parent=1 // pred_check_branch
      %9 = sbr.rel (0) target = $region5
    $region4: #{tpu_custom_call.1} parent=1 // pred_region
      %11 = vsyncadd [#allocation3], 0
      %s13 = sshll.u32 %s0, 4
      %s14 = int_to_ptr.hbm [resolvable:$true] %s13
      %s15 = sshll.u32 [#allocation2], 4
      %s16 = int_to_ptr.vmem [resolvable:$true] %s15
      %18 = dma.hbm_to_vmem [thread:$0]  %s14, 256, %s16, [#allocation3]
    $region5: #{tpu_custom_call.1} parent=1 // pred_fallthru
      _
    // Predicated region
    $region6: #{tpu_custom_call.1} parent=1 // pred_check
      _
    $region7: #{tpu_custom_call.1} parent=1 // pred_check_branch
      %20 = sbr.rel (0) target = $region9
    $region8: #{tpu_custom_call.1} parent=1 // pred_region
      %22 = dma.done [#allocation3], 256
    $region9: #{tpu_custom_call.1} parent=1 // pred_fallthru
      _
    %v23 = vld [vmem:[#allocation2] sm:$0xff]
    %v24 = vld [vmem:[#allocation2 + $0x8] sm:$0xff]
    %25 = vst [vmem:[#allocation5] sm:$0xff] %v23
    %26 = vst [vmem:[#allocation5 + $0x8] sm:$0xff] %v24
    // Predicated region
    $region10: #{tpu_custom_call.1} parent=1 // pred_check
      _
    $region11: #{tpu_custom_call.1} parent=1 // pred_check_branch
      %28 = sbr.rel (0) target = $region13
    $region12: #{tpu_custom_call.1} parent=1 // pred_region
      %30 = vsyncadd [#allocation4], 0
      %s32 = sshll.u32 [#allocation5], 4
      %s33 = int_to_ptr.vmem [resolvable:$true] %s32
      %s34 = sshll.u32 %s1, 4
      %s35 = int_to_ptr.hbm [resolvable:$true] %s34
      %37 = dma.vmem_to_hbm [thread:$0]  %s33, 256, %s35, [#allocation4]
    $region13: #{tpu_custom_call.1} parent=1 // pred_fallthru
      _
    // Predicated region
    $region14: #{tpu_custom_call.1} parent=1 // pred_check
      _
    $region15: #{tpu_custom_call.1} parent=1 // pred_check_branch
      %39 = sbr.rel (0) target = $region17
    $region16: #{tpu_custom_call.1} parent=1 // pred_region
      %41 = dma.done [#allocation4], 256
    $region17: #{tpu_custom_call.1} parent=1 // pred_fallthru
      _
    %42 = vsyncpa [#allocation3], 1
    %43 = vsyncpa [#allocation4], 1

</llo_original>
